<compile_context>
chip_gen: v7x
topology: tpu7x:2x2x1
jax: 0.10.0
libtpu: 0.0.40
codegen_flags: <defaults>
</compile_context>

<pallas_src>
import functools

import jax
import jax.numpy as jnp
from jax.experimental import pallas as pl
from jax.experimental.pallas import tpu as pltpu

_LANE = 128
_TM_CAP = 512      # worst-case M tile used when planning the VMEM footprint
_TN_CAP = 2048
_TK_CAP = 2048


def _round_up(x: int, m: int) -> int:
    return ((x + m - 1) // m) * m


@functools.lru_cache(maxsize=None)
def _vmem_capacity_bytes() -> int:
    """Physical VMEM of the current chip; conservative 64 MiB (v7x) fallback."""
    cap = 64 * 1024 * 1024
    try:
        cap = int(pltpu.get_tpu_info().vmem_capacity_bytes)
    except Exception:
        pass
    return cap


def _sublane_multiple(dtype) -> int:
    # Packed-sublane multiple: 8 for 4-byte, 16 for 2-byte, 32 for 1-byte dtypes.
    itemsize = jnp.dtype(dtype).itemsize
    return max(8, 8 * (4 // max(1, itemsize)))


@functools.lru_cache(maxsize=None)
def _plan_nk_tiles(in_dim: int, out_dim: int):
    """Pick (tn, tk) once per layer geometry.  Cached so prepare_* and
    affine_linear are guaranteed to agree on the plan."""
    budget = int(_vmem_capacity_bytes() * 0.70)   # headroom for compiler scratch
    tn = min(_TN_CAP, _round_up(out_dim, _LANE))
    tk = min(_TK_CAP, _round_up(in_dim, _LANE))

    def footprint(tn_, tk_):
        # Worst case: 4-byte elements, tm at its cap, double-buffered inputs and
        # output, plus an f32 accumulator tile.
        tm = _TM_CAP
        return 4 * (2 * tm * tk_ + 2 * tk_ * tn_ + 2 * tn_ + 2 * tm * tn_ + tm * tn_)

    def shrink(t):
        return max(_LANE, (t // 2) // _LANE * _LANE)

    while footprint(tn, tk) > budget and (tn > _LANE or tk > _LANE):
        if tk >= tn and tk > _LANE:
            tk = shrink(tk)
        else:
            tn = shrink(tn)
    return tn, tk


def prepare_affine_linear_params(weight, bias, *, compute_dtype=None):
    """Pad + pre-transpose the Linear parameters ONCE (out of the hot path).

    weight: (out_dim, in_dim)  -- torch.nn.Linear layout
    bias:   (out_dim,)
    Returns (w_kn, b_1n): weight as (k_pad, n_pad) = padded weight.T and
    bias as (1, n_pad) float32.
    """
    out_dim, in_dim = weight.shape
    if compute_dtype is not None:
        weight = weight.astype(compute_dtype)
    tn, tk = _plan_nk_tiles(in_dim, out_dim)
    n_pad = _round_up(out_dim, tn)
    k_pad = _round_up(in_dim, tk)
    w_kn = jnp.zeros((k_pad, n_pad), weight.dtype).at[:in_dim, :out_dim].set(weight.T)
    b_1n = jnp.zeros((1, n_pad), jnp.float32).at[0, :out_dim].set(bias.astype(jnp.float32))
    return w_kn, b_1n


def _matmul_bias_kernel_f32(x_ref, w_ref, b_ref, o_ref):
    # x_ref: (tm, tk)  w_ref: (tk, tn)  b_ref: (1, tn)  o_ref: (tm, tn) f32.
    # Output block is resident across K (index_map ignores k) -> accumulate into it.
    @pl.when(pl.program_id(2) == 0)
    def _init():
        o_ref[...] = jnp.broadcast_to(b_ref[...], o_ref.shape).astype(o_ref.dtype)

    o_ref[...] += jnp.dot(x_ref[...], w_ref[...], preferred_element_type=jnp.float32)


def _matmul_bias_kernel_acc(x_ref, w_ref, b_ref, o_ref, acc_ref):
    # f32 accumulator path for non-f32 (e.g. bf16) outputs.
    k = pl.program_id(2)

    @pl.when(k == 0)
    def _init():
        acc_ref[...] = jnp.zeros_like(acc_ref)

    acc_ref[...] += jnp.dot(x_ref[...], w_ref[...], preferred_element_type=jnp.float32)

    @pl.when(k == pl.num_programs(2) - 1)
    def _finalize():
        o_ref[...] = (acc_ref[...] + b_ref[...]).astype(o_ref.dtype)


@functools.partial(jax.jit, static_argnames=("out_dim",))
def affine_linear(x, w_kn, b_1n, out_dim):
    """y = x @ weight.T + bias  (same math as torch.nn.Linear forward).

    x:    (..., in_dim)
    w_kn: padded, pre-transposed weight (k_pad, n_pad) from prepare_affine_linear_params
    b_1n: padded bias (1, n_pad)
    """
    in_dim = x.shape[-1]
    lead_shape = x.shape[:-1]
    out_dtype = x.dtype

    m = 1
    for d in lead_shape:
        m *= d
    m = max(m, 1)

    # Compute in the weight's dtype (bf16 if prepared that way); accumulation is f32.
    x2d = x.reshape(m, in_dim)
    if x2d.dtype != w_kn.dtype:
        x2d = x2d.astype(w_kn.dtype)

    k_pad, n_pad = w_kn.shape
    tn, tk = _plan_nk_tiles(in_dim, out_dim)   # same (cached) plan as prepare_*

    # --- M tile: dtype-aware sublane multiple; small-M fast path keeps a single
    #     M block so the weight streams from HBM exactly once.
    mult = _sublane_multiple(x2d.dtype)
    m_rounded = _round_up(m, mult)
    tm = m_rounded if m_rounded <= _TM_CAP else _TM_CAP
    m_pad = _round_up(m, tm)

    m_blocks = m_pad // tm
    n_blocks = n_pad // tn
    # Megacore (v7x): keep >=2 blocks on a parallel axis when the grid would
    # otherwise degenerate to (1, 1, K).  Halving keeps tn a multiple of 128 and
    # a divisor of n_pad.
    if m_blocks == 1 and n_blocks == 1 and tn % 256 == 0:
        tn //= 2
        n_blocks = n_pad // tn
    k_blocks = k_pad // tk

    if (m_pad, k_pad) != (m, in_dim):
        x2d = jnp.pad(x2d, ((0, m_pad - m), (0, k_pad - in_dim)))

    grid = (m_blocks, n_blocks, k_blocks)

    out_itemsize = jnp.dtype(out_dtype).itemsize
    cost = pl.CostEstimate(
        flops=2 * m_pad * n_pad * k_pad,
        transcendentals=0,
        bytes_accessed=(
            n_blocks * m_pad * k_pad * x2d.dtype.itemsize      # x re-streamed per N block
            + m_blocks * k_pad * n_pad * w_kn.dtype.itemsize   # W re-streamed per M block
            + m_pad * n_pad * out_itemsize
        ),
    )

    if out_dtype == jnp.float32:
        kernel = _matmul_bias_kernel_f32
        scratch_shapes = []                      # accumulate directly into the output block
    else:
        kernel = _matmul_bias_kernel_acc
        scratch_shapes = [pltpu.VMEM((tm, tn), jnp.float32)]

    vmem_limit = int(_vmem_capacity_bytes() * 0.8)

    out2d = pl.pallas_call(
        kernel,
        out_shape=jax.ShapeDtypeStruct((m_pad, n_pad), out_dtype),
        grid_spec=pltpu.PrefetchScalarGridSpec(
            num_scalar_prefetch=0,
            grid=grid,
            in_specs=[
                pl.BlockSpec((tm, tk), lambda i, j, k: (i, k)),   # x tile (M, K)
                pl.BlockSpec((tk, tn), lambda i, j, k: (k, j)),   # W tile (K, N): canonical MXU layout
                pl.BlockSpec((1, tn), lambda i, j, k: (0, j)),    # bias tile
            ],
            out_specs=pl.BlockSpec((tm, tn), lambda i, j, k: (i, j)),
            scratch_shapes=scratch_shapes,
        ),
        compiler_params=pltpu.CompilerParams(
            dimension_semantics=("parallel", "parallel", "arbitrary"),
            vmem_limit_bytes=vmem_limit,
        ),
        cost_estimate=cost,
    )(x2d, w_kn, b_1n)

    out = out2d[:m, :out_dim]
    return out.reshape(*lead_shape, out_dim)


if __name__ == "__main__":
    # Small shapes consistent with the module: (batch, seq, in_dim) style input.
    batch, seq, in_dim, out_dim = 2, 8, 32, 64

    key = jax.random.PRNGKey(0)
    kx, kw, kb = jax.random.split(key, 3)

    # Deterministic "nn.Linear-like" init (uniform in +/- 1/sqrt(in_dim)).
    bound = 1.0 / (in_dim ** 0.5)
    weight = jax.random.uniform(kw, (out_dim, in_dim), jnp.float32, -bound, bound)
    bias = jax.random.uniform(kb, (out_dim,), jnp.float32, -bound, bound)
    x = jax.random.normal(kx, (batch, seq, in_dim), jnp.float32)

    # Pad + pre-transpose the parameters once (hoisted out of the per-call path).
    # For bf16 MXU compute, pass compute_dtype=jnp.bfloat16 here.
    w_kn, b_1n = prepare_affine_linear_params(weight, bias)

    y = affine_linear(x, w_kn, b_1n, out_dim)
    jax.block_until_ready(y)

    # Reference check against plain JAX (same math as torch.nn.Linear).
    y_ref = x @ weight.T + bias
    assert y.shape == (batch, seq, out_dim)
    assert jnp.allclose(y, y_ref, atol=1e-5, rtol=1e-5)

    print("KERNEL_OK")
</pallas_src>

<mosaic_0001>
module attributes {stable_mosaic.version = 11 : i64} {
  func.func @_matmul_bias_kernel_f32(%arg0: i32, %arg1: i32, %arg2: i32, %arg3: memref<16x128xf32, #tpu.memory_space<vmem>>, %arg4: memref<128x128xf32, #tpu.memory_space<vmem>>, %arg5: memref<1x128xf32, #tpu.memory_space<vmem>>, %arg6: memref<16x128xf32, #tpu.memory_space<vmem>>) attributes {dimension_semantics = [#tpu.dimension_semantics<parallel>, #tpu.dimension_semantics<parallel>, #tpu.dimension_semantics<arbitrary>], iteration_bounds = array<i64: 1, 1, 1>, scalar_prefetch = 0 : i64, scratch_operands = 0 : i64, tpu.core_type = #tpu.core_type<tc>, window_params = [{transform_indices = @transform_0, window_bounds = array<i64: 16, 128>}, {transform_indices = @transform_1, window_bounds = array<i64: 128, 128>}, {transform_indices = @transform_2, window_bounds = array<i64: 1, 128>}, {transform_indices = @transform_3, window_bounds = array<i64: 16, 128>}]} {
    %c0_i32 = arith.constant 0 : i32
    %0 = arith.cmpi eq, %arg2, %c0_i32 : i32
    %1 = arith.extui %0 : i1 to i32
    %c0_i32_0 = arith.constant 0 : i32
    %2 = arith.cmpi ne, %1, %c0_i32_0 : i32
    scf.if %2 {
      %c0_8 = arith.constant 0 : index
      %c0_9 = arith.constant 0 : index
      %9 = vector.load %arg5[%c0_8, %c0_9] : memref<1x128xf32, #tpu.memory_space<vmem>>, vector<1x128xf32>
      %10 = vector.shape_cast %9 : vector<1x128xf32> to vector<1x128xf32>
      %11 = vector.broadcast %10 : vector<1x128xf32> to vector<16x128xf32>
      %c0_10 = arith.constant 0 : index
      %c0_11 = arith.constant 0 : index
      %12 = vector.load %arg6[%c0_10, %c0_11] : memref<16x128xf32, #tpu.memory_space<vmem>>, vector<16x128xf32>
      tpu.vector_store %arg6[%c0_10, %c0_11], %11 {strides = array<i32>} : memref<16x128xf32, #tpu.memory_space<vmem>>, vector<16x128xf32>,
    } else {
    }
    %c0 = arith.constant 0 : index
    %c0_1 = arith.constant 0 : index
    %3 = vector.load %arg6[%c0, %c0_1] : memref<16x128xf32, #tpu.memory_space<vmem>>, vector<16x128xf32>
    %c0_2 = arith.constant 0 : index
    %c0_3 = arith.constant 0 : index
    %4 = vector.load %arg3[%c0_2, %c0_3] : memref<16x128xf32, #tpu.memory_space<vmem>>, vector<16x128xf32>
    %c0_4 = arith.constant 0 : index
    %c0_5 = arith.constant 0 : index
    %5 = vector.load %arg4[%c0_4, %c0_5] : memref<128x128xf32, #tpu.memory_space<vmem>>, vector<128x128xf32>
    %cst = arith.constant dense<0.000000e+00> : vector<16x128xf32>
    %6 = tpu.matmul %4, %5, %cst {dimension_numbers = #tpu.dot_dimension_numbers<[1], [0], [0], [1], [0, 0, 1, 1], [], []>} : vector<16x128xf32>, vector<128x128xf32>, vector<16x128xf32> -> vector<16x128xf32>
    %7 = arith.addf %3, %6 : vector<16x128xf32>
    %c0_6 = arith.constant 0 : index
    %c0_7 = arith.constant 0 : index
    %8 = vector.load %arg6[%c0_6, %c0_7] : memref<16x128xf32, #tpu.memory_space<vmem>>, vector<16x128xf32>
    tpu.vector_store %arg6[%c0_6, %c0_7], %7 {strides = array<i32>} : memref<16x128xf32, #tpu.memory_space<vmem>>, vector<16x128xf32>,
    return
  }
  func.func @transform_0(%arg0: i32, %arg1: i32, %arg2: i32) -> (i32, i32) {
    %c0_i32 = arith.constant 0 : i32
    return %arg0, %arg2 : i32, i32
  }
  func.func @transform_1(%arg0: i32, %arg1: i32, %arg2: i32) -> (i32, i32) {
    %c0_i32 = arith.constant 0 : i32
    return %arg2, %arg1 : i32, i32
  }
  func.func @transform_2(%arg0: i32, %arg1: i32, %arg2: i32) -> (i32, i32) {
    %c0_i32 = arith.constant 0 : i32
    %c0_i32_0 = arith.constant 0 : i32
    return %c0_i32, %arg1 : i32, i32
  }
  func.func @transform_3(%arg0: i32, %arg1: i32, %arg2: i32) -> (i32, i32) {
    %c0_i32 = arith.constant 0 : i32
    return %arg0, %arg1 : i32, i32
  }
}

</mosaic_0001>

<llo_original>
// kernel: affine_linear.1
$region0: #{affine_linear.1}
  #allocation0 [shape = 'u32[]', space=smem, size = 0x4, offset = 0x4, fixed_abs, tag = 'smem constant byte address 0x4 - core index']
  #allocation1 [shape = 'u32[144,128]{1,0:T(1,128)}', space=vmem, size = 0x12000, scoped, tag = 'internal scratch']
  %s0 = inlined_call_operand.vmem [shape: f32[16,128], index: 0, kind: input, shape index: {}]
  %s1 = inlined_call_operand.hbm [shape: f32[128,128], index: 1, kind: input, shape index: {}]
  %s2 = inlined_call_operand.vmem [shape: f32[1,128], index: 2, kind: input, shape index: {}]
  %s3 = inlined_call_operand.vmem [shape: f32[16,128], index: 3, kind: output, shape index: {}]
  %s4 = sld [smem:[#allocation0]]
  $region30: #{affine_linear.1} parent=0
    _
  %s6 = ssub.s32 1, %s4
  %s7 = scalar_select 0, %s6, %s4
  $region1: #{affine_linear.1} parent=0
    #allocation2 [shape = 'u8[65536]{0}', space=vmem, size = 0x10000, scoped, tag = 'input window, operand 1, single buffered']
    #allocation3 [shape = 's32[1]{0}', space=sflag, size = 0x4, scoped, tag = 'scoped memory for affine_linear.1']
    %8 = vsyncpa [#allocation3], 0
    // Predicated region
    $region2: #{affine_linear.1} parent=1 // pred_check
      _
    $region3: #{affine_linear.1} parent=1 // pred_check_branch
      %10 = sbr.rel (0) target = $region5
    $region4: #{affine_linear.1} parent=1 // pred_region
      _
    $region5: #{affine_linear.1} parent=1 // pred_fallthru
      _
    // Predicated region
    $region6: #{affine_linear.1} parent=1 // pred_check
      _
    $region7: #{affine_linear.1} parent=1 // pred_check_branch
      %12 = sbr.rel (0) target = $region9
    $region8: #{affine_linear.1} parent=1 // pred_region
      %s14 = ssub.s32 2048, 2048
      %15 = vsyncadd [#allocation3], %s14
      %s16 = sshll.u32 [#allocation2], 4
      %s17 = int_to_ptr.vmem [resolvable:$true] %s16
      %22 = dma.hbm_to_vmem [thread:$0]  %s1, 2048, %s17, [#allocation3], 128, 128, 8
    $region9: #{affine_linear.1} parent=1 // pred_fallthru
      _
    // Predicated region
    $region10: #{affine_linear.1} parent=1 // pred_check
      _
    $region11: #{affine_linear.1} parent=1 // pred_check_branch
      %24 = sbr.rel (0) target = $region13
    $region12: #{affine_linear.1} parent=1 // pred_region
      _
    $region13: #{affine_linear.1} parent=1 // pred_fallthru
      _
    // Predicated region
    $region14: #{affine_linear.1} parent=1 // pred_check
      _
    $region15: #{affine_linear.1} parent=1 // pred_check_branch
      %26 = sbr.rel (0) target = $region17
    $region16: #{affine_linear.1} parent=1 // pred_region
      %27 = dma.done [#allocation3], 2048
    $region17: #{affine_linear.1} parent=1 // pred_fallthru
      _
    %p28 = scmp.eq.s32.totalorder 0, 0
    // Predicated region
    $region18: #{affine_linear.1} parent=1 // pred_check
      %p29 = pneg %p28
    $region19: #{affine_linear.1} parent=1 // pred_check_branch
      %31 = sbr.rel (%p29) target = $region21
    $region20: #{affine_linear.1} parent=1 // pred_region
      %v32 = vld [vmem:[%s2] sm:$0x1]
      %v34 = vlaneseq
      %v35 = vshrl.u32 %v34, 7
      %v36 = vsub.s32 0, %v35
      %v37 = vrot.slane %v32, %v36
      %39 = vst [vmem:[%s3] sm:$0xff] %v37
      %40 = vst [vmem:[%s3 + $0x8] sm:$0xff] %v37
    $region21: #{affine_linear.1} parent=1 // pred_fallthru
      _
    %v41 = vld [vmem:[%s3] sm:$0xff]
    %v42 = vld [vmem:[%s3 + $0x8] sm:$0xff]
    %v43 = vld [vmem:[%s0] sm:$0xff]
    %v44 = vld [vmem:[%s0 + $0x8] sm:$0xff]
    %v45 = vld [vmem:[#allocation2] sm:$0xff]
    %v46 = vld [vmem:[#allocation2 + $0x8] sm:$0xff]
    %v47 = vld [vmem:[#allocation2 + $0x10] sm:$0xff]
    %v48 = vld [vmem:[#allocation2 + $0x18] sm:$0xff]
    %v49 = vld [vmem:[#allocation2 + $0x20] sm:$0xff]
    %v50 = vld [vmem:[#allocation2 + $0x28] sm:$0xff]
    %v51 = vld [vmem:[#allocation2 + $0x30] sm:$0xff]
    %v52 = vld [vmem:[#allocation2 + $0x38] sm:$0xff]
    %v53 = vld [vmem:[#allocation2 + $0x40] sm:$0xff]
    %v54 = vld [vmem:[#allocation2 + $0x48] sm:$0xff]
    %v55 = vld [vmem:[#allocation2 + $0x50] sm:$0xff]
    %v56 = vld [vmem:[#allocation2 + $0x58] sm:$0xff]
    %v57 = vld [vmem:[#allocation2 + $0x60] sm:$0xff]
    %v58 = vld [vmem:[#allocation2 + $0x68] sm:$0xff]
    %v59 = vld [vmem:[#allocation2 + $0x70] sm:$0xff]
    %v60 = vld [vmem:[#allocation2 + $0x78] sm:$0xff]
    %61 = vmatprep.subr.mxu0 0.0
    %62 = vmatpush1.msra.mxu0 %v45
    %63 = vmatprep.subr.mxu0 0.0
    %64 = vmatpush1.msra.mxu0 %v46
    %65 = vmatprep.subr.mxu0 0.0
    %66 = vmatpush1.msra.mxu0 %v47
    %67 = vmatprep.subr.mxu0 0.0
    %68 = vmatpush1.msra.mxu0 %v48
    %69 = vmatprep.subr.mxu0 0.0
    %70 = vmatpush1.msra.mxu0 %v49
    %71 = vmatprep.subr.mxu0 0.0
    %72 = vmatpush1.msra.mxu0 %v50
    %73 = vmatprep.subr.mxu0 0.0
    %74 = vmatpush1.msra.mxu0 %v51
    %75 = vmatprep.subr.mxu0 0.0
    %76 = vmatpush1.msra.mxu0 %v52
    %77 = vmatprep.subr.mxu0 0.0
    %78 = vmatpush1.msra.mxu0 %v53
    %79 = vmatprep.subr.mxu0 0.0
    %80 = vmatpush1.msra.mxu0 %v54
    %81 = vmatprep.subr.mxu0 0.0
    %82 = vmatpush1.msra.mxu0 %v55
    %83 = vmatprep.subr.mxu0 0.0
    %84 = vmatpush1.msra.mxu0 %v56
    %85 = vmatprep.subr.mxu0 0.0
    %86 = vmatpush1.msra.mxu0 %v57
    %87 = vmatprep.subr.mxu0 0.0
    %88 = vmatpush1.msra.mxu0 %v58
    %89 = vmatprep.subr.mxu0 0.0
    %90 = vmatpush1.msra.mxu0 %v59
    %91 = vmatprep.subr.mxu0 0.0
    %92 = vmatpush1.msra.mxu0 %v60
    %93 = vmatprep.subr.mxu0 0.0
    %94 = vmatpush1.msra.mxu0 0.0
    %95 = vmatprep.subr.mxu0 0.0
    %96 = vmatpush1.msra.mxu0 0.0
    %97 = vmatprep.subr.mxu0 0.0
    %98 = vmatpush1.msra.mxu0 0.0
    %99 = vmatprep.subr.mxu0 0.0
    %100 = vmatpush1.msra.mxu0 0.0
    %101 = vmatprep.subr.mxu0 0.0
    %102 = vmatpush1.msra.mxu0 0.0
    %103 = vmatprep.subr.mxu0 0.0
    %104 = vmatpush1.msra.mxu0 0.0
    %105 = vmatprep.subr.mxu0 0.0
    %106 = vmatpush1.msra.mxu0 0.0
    %107 = vmatprep.subr.mxu0 0.0
    %108 = vmatpush1.msra.mxu0 0.0
    %109 = vmatprep.subr.mxu0 0.0
    %110 = vmatpush1.msra.mxu0 0.0
    %111 = vmatprep.subr.mxu0 0.0
    %112 = vmatpush1.msra.mxu0 0.0
    %113 = vmatprep.subr.mxu0 0.0
    %114 = vmatpush1.msra.mxu0 0.0
    %115 = vmatprep.subr.mxu0 0.0
    %116 = vmatpush1.msra.mxu0 0.0
    %117 = vmatprep.subr.mxu0 0.0
    %118 = vmatpush1.msra.mxu0 0.0
    %119 = vmatprep.subr.mxu0 0.0
    %120 = vmatpush1.msra.mxu0 0.0
    %121 = vmatprep.subr.mxu0 0.0
    %122 = vmatpush1.msra.mxu0 0.0
    %123 = vmatprep.subr.mxu0 0.0
    %124 = vmatpush1.msra.mxu0 0.0
    %125 = vmatprep.mubr.f32.mxu0 0.0
    %126 = vmatmul.mubr.f32.gmra.mrb[0].mxu0 %v43
    %v127 = vpop.f32.mrb[0].mxu0
    %v128 = vadd.f32 0.0, %v127
    %v129 = vpop.f32.mrb[0].mxu0
    %130 = vmatprep.mubr.f32.mxu0 0.0
    %131 = vmatmul.mubr.f32.gmra.mrb[0].mxu0 %v44
    %v132 = vpop.f32.mrb[0].mxu0
    %v133 = vadd.f32 0.0, %v132
    %v134 = vpop.f32.mrb[0].mxu0
    %135 = vdwg.mxu0
    %v136 = vadd.f32 %v41, %v128
    %v137 = vadd.f32 %v42, %v133
    %138 = vst [vmem:[%s3] sm:$0xff] %v136
    %139 = vst [vmem:[%s3 + $0x8] sm:$0xff] %v137
    // Predicated region
    $region22: #{affine_linear.1} parent=1 // pred_check
      _
    $region23: #{affine_linear.1} parent=1 // pred_check_branch
      %141 = sbr.rel (0) target = $region25
    $region24: #{affine_linear.1} parent=1 // pred_region
      _
    $region25: #{affine_linear.1} parent=1 // pred_fallthru
      _
    // Predicated region
    $region26: #{affine_linear.1} parent=1 // pred_check
      _
    $region27: #{affine_linear.1} parent=1 // pred_check_branch
      %143 = sbr.rel (0) target = $region29
    $region28: #{affine_linear.1} parent=1 // pred_region
      _
    $region29: #{affine_linear.1} parent=1 // pred_fallthru
      _
    %144 = vsyncpa [#allocation3], 1

</llo_original>
